<compile_context>
chip_gen: v7x
topology: tpu7x:2x2x1
jax: 0.10.0
libtpu: 0.0.40
codegen_flags: <defaults>
</compile_context>

<pallas_src>
import functools
import math

import numpy as np

import jax
import jax.numpy as jnp
from jax.experimental import pallas as pl
from jax.experimental.pallas import tpu as pltpu


def _round_up(x, m):
    return ((x + m - 1) // m) * m


def _derive_vmem_limit():
    """Scoped-VMEM request derived from the actual chip (v7x has only 64 MiB)."""
    try:
        cap = pltpu.get_tpu_info().vmem_capacity_bytes
    except Exception:  # interpret mode / older jax: stay conservative.
        return 48 * 1024 * 1024
    return int(min((cap * 3) // 4, 96 * 1024 * 1024))


# -----------------------------------------------------------------------------
# Kernel 1: fused Q/K/V projection -- one matmul per token tile.
# -----------------------------------------------------------------------------
def _qkv_proj_kernel(x_ref, w_ref, b_ref, qkv_ref, *, compute_dtype):
    x = x_ref[...].astype(compute_dtype)                     # (tm, H)
    acc = jnp.dot(x, w_ref[...],                             # (H, 3H) resident
                  preferred_element_type=jnp.float32)        # f32 accumulation
    acc = acc + b_ref[...].astype(jnp.float32)               # (1, 3H) broadcast
    qkv_ref[...] = acc.astype(qkv_ref.dtype)                 # lane-dense store


# -----------------------------------------------------------------------------
# Kernel 2: attention for one batch element (all heads, full key axis).
# The 1/sqrt(d) scale is already folded into the Q projection weights.
# -----------------------------------------------------------------------------
def _attention_kernel(qkv_ref, o_ref, *, num_heads, head_dim, hidden,
                      compute_dtype, approx_recip):
    dn_t = (((1,), (1,)), ((), ()))          # contract last dims -> q @ k^T
    ctx_parts = []
    for h in range(num_heads):               # unrolled: back-to-back MXU matmuls
        lo = h * head_dim
        q = qkv_ref[:, lo:lo + head_dim].astype(compute_dtype)             # (S, d)
        k = qkv_ref[:, hidden + lo:hidden + lo + head_dim].astype(compute_dtype)
        v = qkv_ref[:, 2 * hidden + lo:2 * hidden + lo + head_dim].astype(compute_dtype)

        s = jax.lax.dot_general(q, k, dn_t,
                                preferred_element_type=jnp.float32)        # (S, S)
        # TODO(synk): + attention_mask, relative position scores, * head_mask.
        m = jnp.max(s, axis=-1, keepdims=True)
        p = jnp.exp(s - m)                                                 # f32
        l = jnp.sum(p, axis=-1, keepdims=True)
        # Unnormalized context; normalization deferred to the (S, d) tile and
        # done with the EUP reciprocal (own VLIW slot).
        ctx = jnp.dot(p.astype(compute_dtype), v,
                      preferred_element_type=jnp.float32)                  # (S, d)
        ctx = ctx * pl.reciprocal(l, approx=approx_recip)
        # attention-prob dropout is identity in eval mode.
        ctx_parts.append(ctx)

    # Single full-width (S, H) store: lane-dense, already in (B, S, H) layout.
    o_ref[...] = jnp.concatenate(ctx_parts, axis=-1).astype(o_ref.dtype)


# -----------------------------------------------------------------------------
# Wrapper
# -----------------------------------------------------------------------------
def bert_self_attention(hidden_states, q_w, q_b, k_w, k_b, v_w, v_b, *,
                        num_heads, tile_tokens=None, compute_dtype=None,
                        vmem_limit_bytes=None):
    """hidden_states: (B, S, H). Weights are nn.Linear layout (out, in)."""
    B, S, H = hidden_states.shape
    assert H % num_heads == 0
    d = H // num_heads
    H3 = 3 * H
    dtype = hidden_states.dtype
    tokens = B * S

    if compute_dtype is None:
        # The MXU has no native f32 path: feed bf16 operands, accumulate in f32.
        compute_dtype = jnp.bfloat16 if dtype == jnp.float32 else dtype
    compute_dtype = np.dtype(compute_dtype)
    approx_recip = compute_dtype != np.dtype(np.float32)

    if vmem_limit_bytes is None:
        vmem_limit_bytes = _derive_vmem_limit()
    if tile_tokens is None:
        # v5e/v6e (128 MiB VMEM) afford 1024-token tiles; v7x (64 MiB) -> 512.
        tile_tokens = 1024 if vmem_limit_bytes >= (64 << 20) else 512

    scale = 1.0 / math.sqrt(d)

    # Fused QKV parameters.  One-time parameter re-layout (in a real model this
    # would be precomputed once, not per forward).  1/sqrt(d) is folded into
    # the Q weight/bias, so no score scaling happens at runtime.
    w_qkv = jnp.concatenate([q_w.T * scale, k_w.T, v_w.T],
                            axis=1).astype(compute_dtype)        # (H, 3H)
    b_qkv = jnp.concatenate([q_b * scale, k_b, v_b]
                            ).reshape(1, H3).astype(jnp.float32)  # (1, 3H)

    # ---- Kernel 1: Q/K/V projection over flattened tokens -------------------
    tm = min(tile_tokens, _round_up(tokens, 8))
    tokens_pad = _round_up(tokens, tm)
    x2d = hidden_states.reshape(tokens, H)
    if tokens_pad != tokens:
        x2d = jnp.pad(x2d, ((0, tokens_pad - tokens), (0, 0)))

    def call_qkv(single_buffer_weights):
        resident = (dict(pipeline_mode=pl.Buffered(1))
                    if single_buffer_weights else {})
        return pl.pallas_call(
            functools.partial(_qkv_proj_kernel, compute_dtype=compute_dtype),
            out_shape=jax.ShapeDtypeStruct((tokens_pad, H3), compute_dtype),
            grid=(tokens_pad // tm,),
            in_specs=[
                pl.BlockSpec((tm, H), lambda i: (i, 0)),                # tokens
                pl.BlockSpec((H, H3), lambda i: (0, 0), **resident),    # weights
                pl.BlockSpec((1, H3), lambda i: (0, 0), **resident),    # bias
            ],
            out_specs=pl.BlockSpec((tm, H3), lambda i: (i, 0)),
            compiler_params=pltpu.CompilerParams(
                dimension_semantics=("parallel",),
                vmem_limit_bytes=vmem_limit_bytes),
        )(x2d, w_qkv, b_qkv)

    try:
        # Constant index_map -> weights never re-fetched; single buffer saves
        # their second VMEM copy (matters most on v7x's 64 MiB VMEM).
        qkv2d = call_qkv(True)
    except Exception:  # Pallas version without Buffered(1) support: default 2x.
        qkv2d = call_qkv(False)

    qkv = qkv2d[:tokens].reshape(B, S, H3)       # row-major: free reshape

    # ---- Kernel 2: attention, one batch element per grid step ---------------
    attn_kernel = functools.partial(
        _attention_kernel, num_heads=num_heads, head_dim=d, hidden=H,
        compute_dtype=compute_dtype, approx_recip=approx_recip)

    ctx = pl.pallas_call(
        attn_kernel,
        out_shape=jax.ShapeDtypeStruct((B, S, H), dtype),
        grid=(B,),
        in_specs=[pl.BlockSpec((None, S, H3), lambda b: (b, 0, 0))],
        out_specs=pl.BlockSpec((None, S, H), lambda b: (b, 0, 0)),
        compiler_params=pltpu.CompilerParams(
            dimension_semantics=("parallel",),
            vmem_limit_bytes=vmem_limit_bytes),
    )(qkv)
    return ctx


# -----------------------------------------------------------------------------
# Pure-JAX reference
# -----------------------------------------------------------------------------
def _reference(hidden_states, q_w, q_b, k_w, k_b, v_w, v_b, num_heads):
    B, S, H = hidden_states.shape
    d = H // num_heads

    def proj(w, b):
        return jnp.einsum("bsh,oh->bso", hidden_states, w) + b

    def heads(t):
        return t.reshape(B, S, num_heads, d).transpose(0, 2, 1, 3)

    q, k, v = heads(proj(q_w, q_b)), heads(proj(k_w, k_b)), heads(proj(v_w, v_b))
    scores = jnp.einsum("bhqd,bhkd->bhqk", q, k) / math.sqrt(d)
    probs = jax.nn.softmax(scores, axis=-1)
    ctx = jnp.einsum("bhqk,bhkd->bhqd", probs, v)
    return ctx.transpose(0, 2, 1, 3).reshape(B, S, H)


if __name__ == "__main__":
    # Small config: batch=2, seq=8, hidden=32, heads=4 (head_dim=8)
    B, S, H, NH = 2, 8, 32, 4

    key = jax.random.PRNGKey(0)
    ks = jax.random.split(key, 7)

    hidden_states = jax.random.normal(ks[0], (B, S, H), dtype=jnp.float32)
    # Deterministic synthetic parameters (nn.Linear layout: (out, in))
    q_w = jax.random.normal(ks[1], (H, H), dtype=jnp.float32) * 0.05
    k_w = jax.random.normal(ks[2], (H, H), dtype=jnp.float32) * 0.05
    v_w = jax.random.normal(ks[3], (H, H), dtype=jnp.float32) * 0.05
    q_b = jax.random.normal(ks[4], (H,), dtype=jnp.float32) * 0.02
    k_b = jax.random.normal(ks[5], (H,), dtype=jnp.float32) * 0.02
    v_b = jax.random.normal(ks[6], (H,), dtype=jnp.float32) * 0.02

    ref = _reference(hidden_states, q_w, q_b, k_w, k_b, v_w, v_b, NH)

    # Fast path: bf16 MXU operands, f32 accumulation (default for f32 models).
    out = bert_self_attention(hidden_states, q_w, q_b, k_w, k_b, v_w, v_b,
                              num_heads=NH)
    out = jax.block_until_ready(out)
    assert out.shape == (B, S, H)
    assert jnp.allclose(out, ref, atol=2e-2, rtol=2e-2), "bf16-path mismatch"

    # Exact-math path (f32 MXU operands, exact reciprocal): tight check.
    out_f32 = bert_self_attention(hidden_states, q_w, q_b, k_w, k_b, v_w, v_b,
                                  num_heads=NH, compute_dtype=jnp.float32)
    out_f32 = jax.block_until_ready(out_f32)
    assert jnp.allclose(out_f32, ref, atol=1e-4, rtol=1e-4), "f32-path mismatch"

    print("KERNEL_OK")
</pallas_src>

<mosaic_0001>
module attributes {stable_mosaic.version = 11 : i64} {
  func.func @_qkv_proj_kernel(%arg0: i32, %arg1: memref<16x32xf32, #tpu.memory_space<vmem>>, %arg2: memref<32x96xbf16, #tpu.memory_space<vmem>>, %arg3: memref<1x96xf32, #tpu.memory_space<vmem>>, %arg4: memref<16x96xbf16, #tpu.memory_space<vmem>>) attributes {dimension_semantics = [#tpu.dimension_semantics<parallel>], iteration_bounds = array<i64: 1>, scalar_prefetch = 0 : i64, scratch_operands = 0 : i64, tpu.core_type = #tpu.core_type<tc>, window_params = [{transform_indices = @transform_0, window_bounds = array<i64: 16, 32>}, {pipeline_mode = #tpu.pipeline_mode<synchronous>, transform_indices = @transform_1, window_bounds = array<i64: 32, 96>}, {pipeline_mode = #tpu.pipeline_mode<synchronous>, transform_indices = @transform_2, window_bounds = array<i64: 1, 96>}, {transform_indices = @transform_3, window_bounds = array<i64: 16, 96>}]} {
    %c0 = arith.constant 0 : index
    %c0_0 = arith.constant 0 : index
    %0 = vector.load %arg1[%c0, %c0_0] : memref<16x32xf32, #tpu.memory_space<vmem>>, vector<16x32xf32>
    %1 = arith.truncf %0 : vector<16x32xf32> to vector<16x32xbf16>
    %c0_1 = arith.constant 0 : index
    %c0_2 = arith.constant 0 : index
    %2 = vector.load %arg2[%c0_1, %c0_2] : memref<32x96xbf16, #tpu.memory_space<vmem>>, vector<32x96xbf16>
    %cst = arith.constant dense<0.000000e+00> : vector<16x96xf32>
    %3 = tpu.matmul %1, %2, %cst {dimension_numbers = #tpu.dot_dimension_numbers<[1], [0], [0], [1], [0, 0, 1, 1], [], []>} : vector<16x32xbf16>, vector<32x96xbf16>, vector<16x96xf32> -> vector<16x96xf32>
    %c0_3 = arith.constant 0 : index
    %c0_4 = arith.constant 0 : index
    %4 = vector.load %arg3[%c0_3, %c0_4] : memref<1x96xf32, #tpu.memory_space<vmem>>, vector<1x96xf32>
    %5 = vector.broadcast %4 : vector<1x96xf32> to vector<16x96xf32>
    %6 = arith.addf %3, %5 : vector<16x96xf32>
    %7 = arith.truncf %6 : vector<16x96xf32> to vector<16x96xbf16>
    %c0_5 = arith.constant 0 : index
    %c0_6 = arith.constant 0 : index
    %8 = vector.load %arg4[%c0_5, %c0_6] : memref<16x96xbf16, #tpu.memory_space<vmem>>, vector<16x96xbf16>
    tpu.vector_store %arg4[%c0_5, %c0_6], %7 {strides = array<i32>} : memref<16x96xbf16, #tpu.memory_space<vmem>>, vector<16x96xbf16>,
    return
  }
  func.func @transform_0(%arg0: i32) -> (i32, i32) {
    %c0_i32 = arith.constant 0 : i32
    %c0_i32_0 = arith.constant 0 : i32
    return %arg0, %c0_i32 : i32, i32
  }
  func.func @transform_1(%arg0: i32) -> (i32, i32) {
    %c0_i32 = arith.constant 0 : i32
    %c0_i32_0 = arith.constant 0 : i32
    %c0_i32_1 = arith.constant 0 : i32
    return %c0_i32, %c0_i32_0 : i32, i32
  }
  func.func @transform_2(%arg0: i32) -> (i32, i32) {
    %c0_i32 = arith.constant 0 : i32
    %c0_i32_0 = arith.constant 0 : i32
    %c0_i32_1 = arith.constant 0 : i32
    return %c0_i32, %c0_i32_0 : i32, i32
  }
  func.func @transform_3(%arg0: i32) -> (i32, i32) {
    %c0_i32 = arith.constant 0 : i32
    %c0_i32_0 = arith.constant 0 : i32
    return %arg0, %c0_i32 : i32, i32
  }
}

module attributes {stable_mosaic.version = 11 : i64} {
  func.func @_qkv_proj_kernel(%arg0: i32, %arg1: memref<16x32xf32, #tpu.memory_space<vmem>>, %arg2: memref<32x96xbf16, #tpu.memory_space<vmem>>, %arg3: memref<1x96xf32, #tpu.memory_space<vmem>>, %arg4: memref<16x96xbf16, #tpu.memory_space<vmem>>) attributes {dimension_semantics = [#tpu.dimension_semantics<parallel>], iteration_bounds = array<i64: 1>, scalar_prefetch = 0 : i64, scratch_operands = 0 : i64, tpu.core_type = #tpu.core_type<tc>, window_params = [{transform_indices = @transform_0, window_bounds = array<i64: 16, 32>}, {pipeline_mode = #tpu.pipeline_mode<synchronous>, transform_indices = @transform_1, window_bounds = array<i64: 32, 96>}, {pipeline_mode = #tpu.pipeline_mode<synchronous>, transform_indices = @transform_2, window_bounds = array<i64: 1, 96>}, {transform_indices = @transform_3, window_bounds = array<i64: 16, 96>}]} {
    %c0 = arith.constant 0 : index
    %c0_0 = arith.constant 0 : index
    %0 = vector.load %arg1[%c0, %c0_0] : memref<16x32xf32, #tpu.memory_space<vmem>>, vector<16x32xf32>
    %1 = arith.truncf %0 : vector<16x32xf32> to vector<16x32xbf16>
    %c0_1 = arith.constant 0 : index
    %c0_2 = arith.constant 0 : index
    %2 = vector.load %arg2[%c0_1, %c0_2] : memref<32x96xbf16, #tpu.memory_space<vmem>>, vector<32x96xbf16>
    %cst = arith.constant dense<0.000000e+00> : vector<16x96xf32>
    %3 = tpu.matmul %1, %2, %cst {dimension_numbers = #tpu.dot_dimension_numbers<[1], [0], [0], [1], [0, 0, 1, 1], [], []>} : vector<16x32xbf16>, vector<32x96xbf16>, vector<16x96xf32> -> vector<16x96xf32>
    %c0_3 = arith.constant 0 : index
    %c0_4 = arith.constant 0 : index
    %4 = vector.load %arg3[%c0_3, %c0_4] : memref<1x96xf32, #tpu.memory_space<vmem>>, vector<1x96xf32>
    %5 = vector.broadcast %4 : vector<1x96xf32> to vector<16x96xf32>
    %6 = arith.addf %3, %5 : vector<16x96xf32>
    %7 = arith.truncf %6 : vector<16x96xf32> to vector<16x96xbf16>
    %c0_5 = arith.constant 0 : index
    %c0_6 = arith.constant 0 : index
    %8 = vector.load %arg4[%c0_5, %c0_6] : memref<16x96xbf16, #tpu.memory_space<vmem>>, vector<16x96xbf16>
    tpu.vector_store %arg4[%c0_5, %c0_6], %7 {strides = array<i32>} : memref<16x96xbf16, #tpu.memory_space<vmem>>, vector<16x96xbf16>,
    return
  }
  func.func @transform_0(%arg0: i32) -> (i32, i32) {
    %c0_i32 = arith.constant 0 : i32
    %c0_i32_0 = arith.constant 0 : i32
    return %arg0, %c0_i32 : i32, i32
  }
  func.func @transform_1(%arg0: i32) -> (i32, i32) {
    %c0_i32 = arith.constant 0 : i32
    %c0_i32_0 = arith.constant 0 : i32
    %c0_i32_1 = arith.constant 0 : i32
    return %c0_i32, %c0_i32_0 : i32, i32
  }
  func.func @transform_2(%arg0: i32) -> (i32, i32) {
    %c0_i32 = arith.constant 0 : i32
    %c0_i32_0 = arith.constant 0 : i32
    %c0_i32_1 = arith.constant 0 : i32
    return %c0_i32, %c0_i32_0 : i32, i32
  }
  func.func @transform_3(%arg0: i32) -> (i32, i32) {
    %c0_i32 = arith.constant 0 : i32
    %c0_i32_0 = arith.constant 0 : i32
    return %arg0, %c0_i32 : i32, i32
  }
}

</mosaic_0001>

<llo_original>
// kernel: tpu_custom_call.1
$region0: #{tpu_custom_call.1}
  #allocation0 [shape = 'u32[]', space=smem, size = 0x4, offset = 0x4, fixed_abs, tag = 'smem constant byte address 0x4 - core index']
  #allocation1 [shape = 'u32[144,128]{1,0:T(1,128)}', space=vmem, size = 0x12000, scoped, tag = 'internal scratch']
  %s0 = inlined_call_operand.hbm [shape: f32[16,32], index: 0, kind: input, shape index: {}]
  %s1 = inlined_call_operand.hbm [shape: bf16[32,96], index: 1, kind: input, shape index: {}]
  %s2 = inlined_call_operand.vmem [shape: f32[1,96], index: 2, kind: input, shape index: {}]
  %s3 = inlined_call_operand.hbm [shape: bf16[16,96], index: 3, kind: output, shape index: {}]
  %s4 = sld [smem:[#allocation0]]
  $region30: #{tpu_custom_call.1} parent=0
    _
  %s6 = ssub.s32 1, %s4
  %s7 = scalar_select 0, %s6, %s4
  $region1: #{tpu_custom_call.1} parent=0
    #allocation2 [shape = 'u8[8192]{0}', space=vmem, size = 0x2000, scoped, tag = 'input window, operand 0, single buffered']
    #allocation3 [shape = 's32[1]{0}', space=sflag, size = 0x4, scoped, tag = 'scoped memory for tpu_custom_call.1']
    #allocation4 [shape = 's32[1]{0}', space=sflag, size = 0x4, scoped, tag = 'scoped memory for tpu_custom_call.1']
    #allocation5 [shape = 'u8[8192]{0}', space=vmem, size = 0x2000, scoped, tag = 'input window, operand 1, single buffered']
    #allocation6 [shape = 's32[1]{0}', space=sflag, size = 0x4, scoped, tag = 'scoped memory for tpu_custom_call.1']
    #allocation7 [shape = 'u8[4096]{0}', space=vmem, size = 0x1000, scoped, tag = 'output window, operand 0, single buffered']
    %8 = vsyncpa [#allocation3], 0
    %9 = vsyncpa [#allocation6], 0
    %10 = vsyncpa [#allocation4], 0
    // Predicated region
    $region2: #{tpu_custom_call.1} parent=1 // pred_check
      _
    $region3: #{tpu_custom_call.1} parent=1 // pred_check_branch
      %12 = sbr.rel (0) target = $region5
    $region4: #{tpu_custom_call.1} parent=1 // pred_region
      %s14 = ssub.s32 256, 256
      %15 = vsyncadd [#allocation3], %s14
      %s16 = sshll.u32 [#allocation2], 4
      %s17 = int_to_ptr.vmem [resolvable:$true] %s16
      %22 = dma.hbm_to_vmem [thread:$0]  %s0, 256, %s17, [#allocation3], 128, 128, 8
    $region5: #{tpu_custom_call.1} parent=1 // pred_fallthru
      _
    // Predicated region
    $region6: #{tpu_custom_call.1} parent=1 // pred_check
      _
    $region7: #{tpu_custom_call.1} parent=1 // pred_check_branch
      %24 = sbr.rel (0) target = $region9
    $region8: #{tpu_custom_call.1} parent=1 // pred_region
      %s26 = ssub.s32 256, 256
      %27 = vsyncadd [#allocation6], %s26
      %s28 = sshll.u32 [#allocation5], 4
      %s29 = int_to_ptr.vmem [resolvable:$true] %s28
      %34 = dma.hbm_to_vmem [thread:$0]  %s1, 256, %s29, [#allocation6], 64, 64, 4
    $region9: #{tpu_custom_call.1} parent=1 // pred_fallthru
      _
    // Predicated region
    $region10: #{tpu_custom_call.1} parent=1 // pred_check
      _
    $region11: #{tpu_custom_call.1} parent=1 // pred_check_branch
      %36 = sbr.rel (0) target = $region13
    $region12: #{tpu_custom_call.1} parent=1 // pred_region
      _
    $region13: #{tpu_custom_call.1} parent=1 // pred_fallthru
      _
    // Predicated region
    $region14: #{tpu_custom_call.1} parent=1 // pred_check
      _
    $region15: #{tpu_custom_call.1} parent=1 // pred_check_branch
      %38 = sbr.rel (0) target = $region17
    $region16: #{tpu_custom_call.1} parent=1 // pred_region
      %39 = dma.done [#allocation3], 256
    $region17: #{tpu_custom_call.1} parent=1 // pred_fallthru
      _
    // Predicated region
    $region18: #{tpu_custom_call.1} parent=1 // pred_check
      _
    $region19: #{tpu_custom_call.1} parent=1 // pred_check_branch
      %41 = sbr.rel (0) target = $region21
    $region20: #{tpu_custom_call.1} parent=1 // pred_region
      %42 = dma.done [#allocation6], 256
    $region21: #{tpu_custom_call.1} parent=1 // pred_fallthru
      _
    %v44 = vld [vmem:[#allocation2] sm:$0xff]
    %v45 = vld [vmem:[#allocation2 + $0x8] sm:$0xff]
    %v46 = vpack.c.bf16 %v45, %v44
    %v47 = vld [vmem:[#allocation5] sm:$0xf]
    %v48 = vld [vmem:[#allocation5 + $0x4] sm:$0xf]
    %v49 = vld [vmem:[#allocation5 + $0x8] sm:$0xf]
    %v50 = vld [vmem:[#allocation5 + $0xc] sm:$0xf]
    %v51 = vld [vmem:[%s2] sm:$0x1]
    %v53 = vlaneseq
    %v54 = vshrl.u32 %v53, 7
    %v55 = vsub.s32 0, %v54
    %v56 = vrot.slane %v51, %v55
    %v62 = vunpack.c.l.b16 %v47
    %v63 = vunpack.c.l.b16 %v48
    %v64 = vunpack.c.l.b16 %v49
    %v65 = vunpack.c.l.b16 %v50
    %v66 = vpack.c.b16 %v63, %v62
    %v67 = vpack.c.b16 %v65, %v64
    %vm70 = vcmask 261120
    %v72 = vsel %vm70, %v46, 0
    %74 = vmatprep.subr.bf16.mxu0 0
    %75 = vmatpush1.bf16.msra.mxu0 %v66
    %76 = vmatprep.subr.bf16.mxu0 0
    %77 = vmatpush1.bf16.msra.mxu0 %v67
    %78 = vmatprep.subr.bf16.mxu0 0
    %79 = vmatpush1.bf16.msra.mxu0 0
    %80 = vmatprep.subr.bf16.mxu0 0
    %81 = vmatpush1.bf16.msra.mxu0 0
    %82 = vmatprep.subr.bf16.mxu0 0
    %83 = vmatpush1.bf16.msra.mxu0 0
    %84 = vmatprep.subr.bf16.mxu0 0
    %85 = vmatpush1.bf16.msra.mxu0 0
    %86 = vmatprep.subr.bf16.mxu0 0
    %87 = vmatpush1.bf16.msra.mxu0 0
    %88 = vmatprep.subr.bf16.mxu0 0
    %89 = vmatpush1.bf16.msra.mxu0 0
    %90 = vmatprep.subr.bf16.mxu0 0
    %91 = vmatpush1.bf16.msra.mxu0 0
    %92 = vmatprep.subr.bf16.mxu0 0
    %93 = vmatpush1.bf16.msra.mxu0 0
    %94 = vmatprep.subr.bf16.mxu0 0
    %95 = vmatpush1.bf16.msra.mxu0 0
    %96 = vmatprep.subr.bf16.mxu0 0
    %97 = vmatpush1.bf16.msra.mxu0 0
    %98 = vmatprep.subr.bf16.mxu0 0
    %99 = vmatpush1.bf16.msra.mxu0 0
    %100 = vmatprep.subr.bf16.mxu0 0
    %101 = vmatpush1.bf16.msra.mxu0 0
    %102 = vmatprep.subr.bf16.mxu0 0
    %103 = vmatpush1.bf16.msra.mxu0 0
    %104 = vmatprep.subr.bf16.mxu0 0
    %105 = vmatpush1.bf16.msra.mxu0 0
    %106 = vmatprep.mubr.bf16.mxu0 0
    %107 = vmatmul.mubr.bf16.gmra.mrb[0].mxu0 %v72
    %v108 = vpop.f32.mrb[0].mxu0
    %v109 = vadd.f32 %v56, %v108
    %v110 = vpop.f32.mrb[0].mxu0
    %v111 = vpop.f32.mrb[0].mxu0
    %v112 = vadd.f32 %v56, %v111
    %v113 = vpop.f32.mrb[0].mxu0
    %114 = vdwg.mxu0
    %v115 = vpack.c.bf16 %v112, %v109
    %v117 = vunpack.c.l.b16 %v115
    %v118 = vunpack.c.h.b16 %v115
    %v119 = vpack.c.b16 %v117, %v117
    %v120 = vpack.c.b16 %v118, %v118
    %vm123 = vcmask 781312
    %124 = vst.msk [vmem:[#allocation7] sm:$0xf] %vm123, %v119
    %125 = vst.msk [vmem:[#allocation7 + $0x4] sm:$0xf] %vm123, %v120
    // Predicated region
    $region22: #{tpu_custom_call.1} parent=1 // pred_check
      _
    $region23: #{tpu_custom_call.1} parent=1 // pred_check_branch
      %127 = sbr.rel (0) target = $region25
    $region24: #{tpu_custom_call.1} parent=1 // pred_region
      %s129 = ssub.s32 128, 128
      %130 = vsyncadd [#allocation4], %s129
      %s131 = sshll.u32 [#allocation7], 4
      %s132 = int_to_ptr.vmem [resolvable:$true] %s131
      %137 = dma.vmem_to_hbm [thread:$0]  %s132, 128, %s3, [#allocation4], 64, 64, 4
    $region25: #{tpu_custom_call.1} parent=1 // pred_fallthru
      _
    // Predicated region
    $region26: #{tpu_custom_call.1} parent=1 // pred_check
      _
    $region27: #{tpu_custom_call.1} parent=1 // pred_check_branch
      %139 = sbr.rel (0) target = $region29
    $region28: #{tpu_custom_call.1} parent=1 // pred_region
      %140 = dma.done [#allocation4], 128
    $region29: #{tpu_custom_call.1} parent=1 // pred_fallthru
      _
    %141 = vsyncpa [#allocation3], 1
    %142 = vsyncpa [#allocation6], 1
    %143 = vsyncpa [#allocation4], 1

// kernel: tpu_custom_call.1
$region0: #{tpu_custom_call.1}
  #allocation0 [shape = 'u32[]', space=smem, size = 0x4, offset = 0x4, fixed_abs, tag = 'smem constant byte address 0x4 - core index']
  #allocation1 [shape = 'u32[144,128]{1,0:T(1,128)}', space=vmem, size = 0x12000, scoped, tag = 'internal scratch']
  %s0 = inlined_call_operand.hbm [shape: f32[16,32], index: 0, kind: input, shape index: {}]
  %s1 = inlined_call_operand.hbm [shape: bf16[32,96], index: 1, kind: input, shape index: {}]
  %s2 = inlined_call_operand.vmem [shape: f32[1,96], index: 2, kind: input, shape index: {}]
  %s3 = inlined_call_operand.hbm [shape: bf16[16,96], index: 3, kind: output, shape index: {}]
  %s4 = sld [smem:[#allocation0]]
  $region30: #{tpu_custom_call.1} parent=0
    _
  %s6 = ssub.s32 1, %s4
  %s7 = scalar_select 0, %s6, %s4
  $region1: #{tpu_custom_call.1} parent=0
    #allocation2 [shape = 'u8[8192]{0}', space=vmem, size = 0x2000, scoped, tag = 'input window, operand 0, single buffered']
    #allocation3 [shape = 's32[1]{0}', space=sflag, size = 0x4, scoped, tag = 'scoped memory for tpu_custom_call.1']
    #allocation4 [shape = 's32[1]{0}', space=sflag, size = 0x4, scoped, tag = 'scoped memory for tpu_custom_call.1']
    #allocation5 [shape = 'u8[8192]{0}', space=vmem, size = 0x2000, scoped, tag = 'input window, operand 1, single buffered']
    #allocation6 [shape = 's32[1]{0}', space=sflag, size = 0x4, scoped, tag = 'scoped memory for tpu_custom_call.1']
    #allocation7 [shape = 'u8[4096]{0}', space=vmem, size = 0x1000, scoped, tag = 'output window, operand 0, single buffered']
    %8 = vsyncpa [#allocation3], 0
    %9 = vsyncpa [#allocation6], 0
    %10 = vsyncpa [#allocation4], 0
    // Predicated region
    $region2: #{tpu_custom_call.1} parent=1 // pred_check
      _
    $region3: #{tpu_custom_call.1} parent=1 // pred_check_branch
      %12 = sbr.rel (0) target = $region5
    $region4: #{tpu_custom_call.1} parent=1 // pred_region
      %s14 = ssub.s32 256, 256
      %15 = vsyncadd [#allocation3], %s14
      %s16 = sshll.u32 [#allocation2], 4
      %s17 = int_to_ptr.vmem [resolvable:$true] %s16
      %22 = dma.hbm_to_vmem [thread:$0]  %s0, 256, %s17, [#allocation3], 128, 128, 8
    $region5: #{tpu_custom_call.1} parent=1 // pred_fallthru
      _
    // Predicated region
    $region6: #{tpu_custom_call.1} parent=1 // pred_check
      _
    $region7: #{tpu_custom_call.1} parent=1 // pred_check_branch
      %24 = sbr.rel (0) target = $region9
    $region8: #{tpu_custom_call.1} parent=1 // pred_region
      %s26 = ssub.s32 256, 256
      %27 = vsyncadd [#allocation6], %s26
      %s28 = sshll.u32 [#allocation5], 4
      %s29 = int_to_ptr.vmem [resolvable:$true] %s28
      %34 = dma.hbm_to_vmem [thread:$0]  %s1, 256, %s29, [#allocation6], 64, 64, 4
    $region9: #{tpu_custom_call.1} parent=1 // pred_fallthru
      _
    // Predicated region
    $region10: #{tpu_custom_call.1} parent=1 // pred_check
      _
    $region11: #{tpu_custom_call.1} parent=1 // pred_check_branch
      %36 = sbr.rel (0) target = $region13
    $region12: #{tpu_custom_call.1} parent=1 // pred_region
      _
    $region13: #{tpu_custom_call.1} parent=1 // pred_fallthru
      _
    // Predicated region
    $region14: #{tpu_custom_call.1} parent=1 // pred_check
      _
    $region15: #{tpu_custom_call.1} parent=1 // pred_check_branch
      %38 = sbr.rel (0) target = $region17
    $region16: #{tpu_custom_call.1} parent=1 // pred_region
      %39 = dma.done [#allocation3], 256
    $region17: #{tpu_custom_call.1} parent=1 // pred_fallthru
      _
    // Predicated region
    $region18: #{tpu_custom_call.1} parent=1 // pred_check
      _
    $region19: #{tpu_custom_call.1} parent=1 // pred_check_branch
      %41 = sbr.rel (0) target = $region21
    $region20: #{tpu_custom_call.1} parent=1 // pred_region
      %42 = dma.done [#allocation6], 256
    $region21: #{tpu_custom_call.1} parent=1 // pred_fallthru
      _
    %v44 = vld [vmem:[#allocation2] sm:$0xff]
    %v45 = vld [vmem:[#allocation2 + $0x8] sm:$0xff]
    %v46 = vpack.c.bf16 %v45, %v44
    %v47 = vld [vmem:[#allocation5] sm:$0xf]
    %v48 = vld [vmem:[#allocation5 + $0x4] sm:$0xf]
    %v49 = vld [vmem:[#allocation5 + $0x8] sm:$0xf]
    %v50 = vld [vmem:[#allocation5 + $0xc] sm:$0xf]
    %v51 = vld [vmem:[%s2] sm:$0x1]
    %v53 = vlaneseq
    %v54 = vshrl.u32 %v53, 7
    %v55 = vsub.s32 0, %v54
    %v56 = vrot.slane %v51, %v55
    %v62 = vunpack.c.l.b16 %v47
    %v63 = vunpack.c.l.b16 %v48
    %v64 = vunpack.c.l.b16 %v49
    %v65 = vunpack.c.l.b16 %v50
    %v66 = vpack.c.b16 %v63, %v62
    %v67 = vpack.c.b16 %v65, %v64
    %vm70 = vcmask 261120
    %v72 = vsel %vm70, %v46, 0
    %74 = vmatprep.subr.bf16.mxu0 0
    %75 = vmatpush1.bf16.msra.mxu0 %v66
    %76 = vmatprep.subr.bf16.mxu0 0
    %77 = vmatpush1.bf16.msra.mxu0 %v67
    %78 = vmatprep.subr.bf16.mxu0 0
    %79 = vmatpush1.bf16.msra.mxu0 0
    %80 = vmatprep.subr.bf16.mxu0 0
    %81 = vmatpush1.bf16.msra.mxu0 0
    %82 = vmatprep.subr.bf16.mxu0 0
    %83 = vmatpush1.bf16.msra.mxu0 0
    %84 = vmatprep.subr.bf16.mxu0 0
    %85 = vmatpush1.bf16.msra.mxu0 0
    %86 = vmatprep.subr.bf16.mxu0 0
    %87 = vmatpush1.bf16.msra.mxu0 0
    %88 = vmatprep.subr.bf16.mxu0 0
    %89 = vmatpush1.bf16.msra.mxu0 0
    %90 = vmatprep.subr.bf16.mxu0 0
    %91 = vmatpush1.bf16.msra.mxu0 0
    %92 = vmatprep.subr.bf16.mxu0 0
    %93 = vmatpush1.bf16.msra.mxu0 0
    %94 = vmatprep.subr.bf16.mxu0 0
    %95 = vmatpush1.bf16.msra.mxu0 0
    %96 = vmatprep.subr.bf16.mxu0 0
    %97 = vmatpush1.bf16.msra.mxu0 0
    %98 = vmatprep.subr.bf16.mxu0 0
    %99 = vmatpush1.bf16.msra.mxu0 0
    %100 = vmatprep.subr.bf16.mxu0 0
    %101 = vmatpush1.bf16.msra.mxu0 0
    %102 = vmatprep.subr.bf16.mxu0 0
    %103 = vmatpush1.bf16.msra.mxu0 0
    %104 = vmatprep.subr.bf16.mxu0 0
    %105 = vmatpush1.bf16.msra.mxu0 0
    %106 = vmatprep.mubr.bf16.mxu0 0
    %107 = vmatmul.mubr.bf16.gmra.mrb[0].mxu0 %v72
    %v108 = vpop.f32.mrb[0].mxu0
    %v109 = vadd.f32 %v56, %v108
    %v110 = vpop.f32.mrb[0].mxu0
    %v111 = vpop.f32.mrb[0].mxu0
    %v112 = vadd.f32 %v56, %v111
    %v113 = vpop.f32.mrb[0].mxu0
    %114 = vdwg.mxu0
    %v115 = vpack.c.bf16 %v112, %v109
    %v117 = vunpack.c.l.b16 %v115
    %v118 = vunpack.c.h.b16 %v115
    %v119 = vpack.c.b16 %v117, %v117
    %v120 = vpack.c.b16 %v118, %v118
    %vm123 = vcmask 781312
    %124 = vst.msk [vmem:[#allocation7] sm:$0xf] %vm123, %v119
    %125 = vst.msk [vmem:[#allocation7 + $0x4] sm:$0xf] %vm123, %v120
    // Predicated region
    $region22: #{tpu_custom_call.1} parent=1 // pred_check
      _
    $region23: #{tpu_custom_call.1} parent=1 // pred_check_branch
      %127 = sbr.rel (0) target = $region25
    $region24: #{tpu_custom_call.1} parent=1 // pred_region
      %s129 = ssub.s32 128, 128
      %130 = vsyncadd [#allocation4], %s129
      %s131 = sshll.u32 [#allocation7], 4
      %s132 = int_to_ptr.vmem [resolvable:$true] %s131
      %137 = dma.vmem_to_hbm [thread:$0]  %s132, 128, %s3, [#allocation4], 64, 64, 4
    $region25: #{tpu_custom_call.1} parent=1 // pred_fallthru
      _
    // Predicated region
    $region26: #{tpu_custom_call.1} parent=1 // pred_check
      _
    $region27: #{tpu_custom_call.1} parent=1 // pred_check_branch
      %139 = sbr.rel (0) target = $region29
    $region28: #{tpu_custom_call.1} parent=1 // pred_region
      %140 = dma.done [#allocation4], 128
    $region29: #{tpu_custom_call.1} parent=1 // pred_fallthru
      _
    %141 = vsyncpa [#allocation3], 1
    %142 = vsyncpa [#allocation6], 1
    %143 = vsyncpa [#allocation4], 1

</llo_original>
